<compile_context>
chip_gen: v6e
topology: v6e:2x2x1
jax: 0.10.0
libtpu: 0.0.40
codegen_flags: <defaults>
</compile_context>

<pallas_src>
import math
import numpy as np
import jax
import jax.numpy as jnp
from jax import lax
from jax.experimental import pallas as pl
from jax.experimental.pallas import tpu as pltpu


def _round_up(x, m):
    return ((x + m - 1) // m) * m


# ------------------------------------------------------------------ sampler --
class LogUniformSampler:
    """Deterministic (seeded) reimplementation of the torch LogUniformSampler."""

    def __init__(self, ntokens, seed=0):
        self.N = ntokens
        self.rng = np.random.RandomState(seed)
        self.prob = [(np.log(i + 2) - np.log(i + 1)) / np.log(self.N + 1)
                     for i in range(self.N)]

    def expected_count(self, num_tries, samples):
        return [-(np.exp(num_tries * np.log(1.0 - self.prob[int(s)])) - 1.0)
                for s in samples]

    def accidental_match(self, labels, samples):
        sample_dict = {}
        for idx in range(len(samples)):
            sample_dict[samples[idx]] = idx          # last duplicate wins (torch semantics)
        result = []
        for idx in range(len(labels)):
            if labels[idx] in sample_dict:
                result.append((idx, sample_dict[labels[idx]]))
        return result

    def sample(self, size, labels):
        log_N = np.log(self.N)
        x = self.rng.uniform(low=0.0, high=1.0, size=size)
        samples = (np.floor(np.exp(x * log_N)).astype(int) - 1).tolist()
        true_freq = self.expected_count(size, list(labels))
        sample_freq = self.expected_count(size, samples)
        return samples, true_freq, sample_freq


# ------------------------------------------------------------------ kernels --
def _sampled_kernel(x_ref, tw_ref, tb_ref, sw_ref, sb_ref, mask_ref,
                    true_out_ref, samp_out_ref):
    x = x_ref[...]                                                   # (B, D)

    # true logits: row-wise dot(inputs, gathered true weights) + (bias - log tf)
    # Written once (output block is identical across the S-tile grid axis).
    @pl.when(pl.program_id(0) == 0)
    def _():
        true_out_ref[...] = (jnp.sum(x * tw_ref[...], axis=1, keepdims=True)
                             + tb_ref[...])                          # (B, 1)

    # sampled logits tile: (B, D) x (TS, D)^T on the MXU (contract dim 1 of
    # both operands — no host-side transpose of the gathered weights).
    s = lax.dot_general(x, sw_ref[...],
                        dimension_numbers=(((1,), (1,)), ((), ())),
                        preferred_element_type=jnp.float32)          # (B, TS)
    s = s + sb_ref[...]                                              # + (bias - log sf)
    # accidental-hit masking (== torch's -1e37 overwrite; -1e37 - log(sf) is
    # bit-identical to -1e37 in f32, so fusing the log-freq subtraction first
    # is numerically equivalent).
    samp_out_ref[...] = jnp.where(mask_ref[...] > 0.0, jnp.float32(-1e37), s)


def _full_kernel(x_ref, w_ref, b_ref, out_ref):
    # full() path tile: inputs @ W_tile^T + b_tile, W_tile is (TV, D).
    out_ref[...] = lax.dot_general(
        x_ref[...], w_ref[...],
        dimension_numbers=(((1,), (1,)), ((), ())),
        preferred_element_type=jnp.float32) + b_ref[...]


_VMEM_LIMIT = 48 * 1024 * 1024   # fits v7x (64 MiB physical), > default scoped limits


# ----------------------------------------------------------------- wrappers --
def sampled_logits_pallas(x, true_w, true_b_eff, sample_w, sample_b_eff,
                          acc_mask, *, ts=512):
    """x:(B,D), true_w:(B,D), true_b_eff:(B,1), sample_w:(S_pad,D),
    sample_b_eff:(1,S_pad), acc_mask:(B,S_pad).  S_pad % 128 == 0.
    Returns (true_logits (B,1), sampled_logits (B,S_pad))."""
    B, D = x.shape
    S_pad = sample_w.shape[0]
    TS = min(ts, S_pad)
    grid = (pl.cdiv(S_pad, TS),)

    return pl.pallas_call(
        _sampled_kernel,
        out_shape=(jax.ShapeDtypeStruct((B, 1), jnp.float32),
                   jax.ShapeDtypeStruct((B, S_pad), jnp.float32)),
        grid=grid,
        in_specs=[
            pl.BlockSpec((B, D), lambda j: (0, 0)),      # x
            pl.BlockSpec((B, D), lambda j: (0, 0)),      # true weights
            pl.BlockSpec((B, 1), lambda j: (0, 0)),      # true bias - log tf
            pl.BlockSpec((TS, D), lambda j: (j, 0)),     # sampled weight tile
            pl.BlockSpec((1, TS), lambda j: (0, j)),     # sampled bias - log sf
            pl.BlockSpec((B, TS), lambda j: (0, j)),     # accidental-hit mask
        ],
        out_specs=(
            pl.BlockSpec((B, 1), lambda j: (0, 0)),      # true logits (resident)
            pl.BlockSpec((B, TS), lambda j: (0, j)),     # lane-dense sampled tile
        ),
        compiler_params=pltpu.CompilerParams(
            dimension_semantics=("arbitrary",),          # true-logit block shared across axis
            vmem_limit_bytes=_VMEM_LIMIT),
    )(x, true_w, true_b_eff, sample_w, sample_b_eff, acc_mask)


def full_logits_pallas(x, weight, bias, *, tv=256):
    """x:(B,D), weight:(V,D) (no host transpose), bias:(V,). Returns (B,V)."""
    B, D = x.shape
    V = weight.shape[0]
    TV = min(tv, V)
    grid = (pl.cdiv(V, TV),)
    bias2d = bias.reshape(1, V)

    cost = pl.CostEstimate(
        flops=2 * B * V * D,
        transcendentals=0,
        bytes_accessed=4 * (B * D + V * D + V + B * V))

    return pl.pallas_call(
        _full_kernel,
        out_shape=jax.ShapeDtypeStruct((B, V), jnp.float32),
        grid=grid,
        in_specs=[
            pl.BlockSpec((B, D), lambda j: (0, 0)),      # activations (resident)
            pl.BlockSpec((TV, D), lambda j: (j, 0)),     # vocab tile of weight
            pl.BlockSpec((1, TV), lambda j: (0, j)),     # bias tile
        ],
        out_specs=pl.BlockSpec((B, TV), lambda j: (0, j)),
        compiler_params=pltpu.CompilerParams(
            dimension_semantics=("parallel",),           # vocab tiles independent (megacore)
            vmem_limit_bytes=_VMEM_LIMIT),
        cost_estimate=cost,
    )(x, weight, bias2d)


# ------------------------------------------------------------------ module ---
class SampledSoftmaxPallas:
    def __init__(self, ntokens, nsampled, nhid, key):
        self.ntokens, self.nsampled, self.nhid = ntokens, nsampled, nhid
        self.sampler = LogUniformSampler(ntokens, seed=0)
        kw, kb = jax.random.split(key)
        # weight: uniform(-stdv, stdv), stdv = sqrt(3 / (ntokens + nhid))  (tied_weight is None)
        stdv = math.sqrt(3.0 / (ntokens + nhid))
        self.weight = jax.random.uniform(kw, (ntokens, nhid), jnp.float32, -stdv, stdv)
        # bias keeps the nn.Linear default init: uniform(-1/sqrt(nhid), 1/sqrt(nhid))
        bb = 1.0 / math.sqrt(nhid)
        self.bias = jax.random.uniform(kb, (ntokens,), jnp.float32, -bb, bb)

    # training branch of forward()
    def forward_train(self, inputs, labels):
        labels_np = np.asarray(labels)
        B = labels_np.shape[0]
        S = self.nsampled
        sample_ids, true_freq, sample_freq = self.sampler.sample(S, labels_np)

        # pad sampled dimension to a multiple of 128 (lane-dense output tiles)
        S_pad = _round_up(S, 128)
        sids_pad = np.zeros((S_pad,), np.int32)
        sids_pad[:S] = np.asarray(sample_ids, np.int32)
        sf_pad = np.ones((S_pad,), np.float32)
        sf_pad[:S] = np.asarray(sample_freq, np.float32)

        sids = jnp.asarray(sids_pad)

        # gathers (host glue; data-dependent integer indexing)
        true_w = self.weight[labels]                          # (B, D)
        true_b = self.bias[labels]                            # (B,)
        sample_w = self.weight[sids]                          # (S_pad, D), no transpose
        sample_b = self.bias[sids]                            # (S_pad,)

        # fuse bias and -log(expected_count) into single epilogue vectors
        true_b_eff = (true_b - jnp.log(jnp.asarray(true_freq, jnp.float32))
                      ).reshape(B, 1)
        sample_b_eff = (sample_b - jnp.log(jnp.asarray(sf_pad))
                        ).reshape(1, S_pad)

        # accidental-hit mask with exact torch dict semantics
        acc_hits = self.sampler.accidental_match(labels_np.tolist(), sample_ids)
        mask = np.zeros((B, S_pad), dtype=np.float32)
        for (i, j) in acc_hits:
            mask[i, j] = 1.0

        true_out, samp_out = sampled_logits_pallas(
            inputs, true_w, true_b_eff, sample_w, sample_b_eff,
            jnp.asarray(mask))
        # logits = cat([true_logits, sample_logits], dim=1); drop lane padding
        logits = jnp.concatenate([true_out, samp_out[:, :S]], axis=1)
        new_targets = jnp.zeros((B,), dtype=jnp.int32)
        return logits, new_targets

    # eval branch of forward()
    def forward_eval(self, inputs):
        return full_logits_pallas(inputs, self.weight, self.bias)


# --------------------------------------------------------------- references --
def _reference_sampled_np(x, true_w, true_b, sample_w, sample_b, tf, sf, mask):
    x = np.asarray(x, np.float64)
    true_w = np.asarray(true_w, np.float64)
    true_b = np.asarray(true_b, np.float64)
    sample_w = np.asarray(sample_w, np.float64)
    sample_b = np.asarray(sample_b, np.float64)
    tf = np.asarray(tf, np.float64)
    sf = np.asarray(sf, np.float64)
    mask = np.asarray(mask, np.float64)
    true_logits = (x * true_w).sum(axis=1) + true_b
    sample_logits = x @ sample_w.T + sample_b
    sample_logits = np.where(mask > 0.0, -1e37, sample_logits)     # torch order
    true_logits = true_logits - np.log(tf)
    sample_logits = sample_logits - np.log(sf)
    return np.concatenate([true_logits[:, None], sample_logits], axis=1)


# -------------------------------------------------------------------- main ---
if __name__ == "__main__":
    ntokens, nsampled, nhid, batch = 1024, 16, 32, 8

    key = jax.random.PRNGKey(0)
    k_mod, k_x, k_lab = jax.random.split(key, 3)

    model = SampledSoftmaxPallas(ntokens, nsampled, nhid, k_mod)
    inputs = jax.random.normal(k_x, (batch, nhid), jnp.float32)
    labels = jax.random.randint(k_lab, (batch,), 0, ntokens, jnp.int32)

    # ---- training forward (sampled softmax) ----
    logits, targets = model.forward_train(inputs, labels)
    logits = jax.block_until_ready(logits)
    assert logits.shape == (batch, nsampled + 1)
    assert targets.shape == (batch,)

    # reference check (fresh sampler with same seed reproduces the same draw)
    labels_np = np.asarray(labels)
    sampler_ref = LogUniformSampler(ntokens, seed=0)
    sample_ids, tf, sf = sampler_ref.sample(nsampled, labels_np)
    sids = jnp.asarray(sample_ids, jnp.int32)
    acc = sampler_ref.accidental_match(labels_np.tolist(), sample_ids)
    mask = np.zeros((batch, nsampled), np.float32)
    for (i, j) in acc:
        mask[i, j] = 1.0
    ref = _reference_sampled_np(
        np.asarray(inputs), np.asarray(model.weight[labels]),
        np.asarray(model.bias[labels]), np.asarray(model.weight[sids]),
        np.asarray(model.bias[sids]), np.asarray(tf), np.asarray(sf), mask)
    np.testing.assert_allclose(np.asarray(logits), ref, rtol=1e-4, atol=1e-4)

    # ---- eval forward (full linear over the whole vocab, tiled) ----
    full_out = jax.block_until_ready(model.forward_eval(inputs))
    assert full_out.shape == (batch, ntokens)
    full_ref = (np.asarray(inputs, np.float64)
                @ np.asarray(model.weight, np.float64).T
                + np.asarray(model.bias, np.float64))
    np.testing.assert_allclose(np.asarray(full_out), full_ref,
                               rtol=1e-4, atol=1e-4)

    print("KERNEL_OK")
</pallas_src>

<mosaic_0001>
module attributes {stable_mosaic.version = 11 : i64} {
  func.func @_sampled_kernel(%arg0: i32, %arg1: memref<8x32xf32, #tpu.memory_space<vmem>>, %arg2: memref<8x32xf32, #tpu.memory_space<vmem>>, %arg3: memref<8x1xf32, #tpu.memory_space<vmem>>, %arg4: memref<128x32xf32, #tpu.memory_space<vmem>>, %arg5: memref<1x128xf32, #tpu.memory_space<vmem>>, %arg6: memref<8x128xf32, #tpu.memory_space<vmem>>, %arg7: memref<8x1xf32, #tpu.memory_space<vmem>>, %arg8: memref<8x128xf32, #tpu.memory_space<vmem>>) attributes {dimension_semantics = [#tpu.dimension_semantics<arbitrary>], iteration_bounds = array<i64: 1>, scalar_prefetch = 0 : i64, scratch_operands = 0 : i64, tpu.core_type = #tpu.core_type<tc>, window_params = [{pipeline_mode = #tpu.pipeline_mode<synchronous>, transform_indices = @transform_0, window_bounds = array<i64: 8, 32>}, {pipeline_mode = #tpu.pipeline_mode<synchronous>, transform_indices = @transform_1, window_bounds = array<i64: 8, 32>}, {pipeline_mode = #tpu.pipeline_mode<synchronous>, transform_indices = @transform_2, window_bounds = array<i64: 8, 1>}, {transform_indices = @transform_3, window_bounds = array<i64: 128, 32>}, {transform_indices = @transform_4, window_bounds = array<i64: 1, 128>}, {transform_indices = @transform_5, window_bounds = array<i64: 8, 128>}, {pipeline_mode = #tpu.pipeline_mode<synchronous>, transform_indices = @transform_6, window_bounds = array<i64: 8, 1>}, {transform_indices = @transform_7, window_bounds = array<i64: 8, 128>}]} {
    %c0 = arith.constant 0 : index
    %c0_0 = arith.constant 0 : index
    %0 = vector.load %arg1[%c0, %c0_0] : memref<8x32xf32, #tpu.memory_space<vmem>>, vector<8x32xf32>
    %c0_i32 = arith.constant 0 : i32
    %1 = arith.cmpi eq, %arg0, %c0_i32 : i32
    %2 = arith.extui %1 : i1 to i32
    %c0_i32_1 = arith.constant 0 : i32
    %3 = arith.cmpi ne, %2, %c0_i32_1 : i32
    scf.if %3 {
      %c0_12 = arith.constant 0 : index
      %c0_13 = arith.constant 0 : index
      %15 = vector.load %arg2[%c0_12, %c0_13] : memref<8x32xf32, #tpu.memory_space<vmem>>, vector<8x32xf32>
      %16 = arith.mulf %0, %15 : vector<8x32xf32>
      %cst_14 = arith.constant dense<0.000000e+00> : vector<8xf32>
      %17 = vector.multi_reduction <add>, %16, %cst_14 [1] : vector<8x32xf32> to vector<8xf32>
      %18 = vector.shape_cast %17 : vector<8xf32> to vector<8x1xf32>
      %c0_15 = arith.constant 0 : index
      %c0_16 = arith.constant 0 : index
      %19 = vector.load %arg3[%c0_15, %c0_16] : memref<8x1xf32, #tpu.memory_space<vmem>>, vector<8x1xf32>
      %20 = arith.addf %18, %19 : vector<8x1xf32>
      %c0_17 = arith.constant 0 : index
      %c0_18 = arith.constant 0 : index
      %21 = vector.load %arg7[%c0_17, %c0_18] : memref<8x1xf32, #tpu.memory_space<vmem>>, vector<8x1xf32>
      tpu.vector_store %arg7[%c0_17, %c0_18], %20 {strides = array<i32>} : memref<8x1xf32, #tpu.memory_space<vmem>>, vector<8x1xf32>,
    } else {
    }
    %c0_2 = arith.constant 0 : index
    %c0_3 = arith.constant 0 : index
    %4 = vector.load %arg4[%c0_2, %c0_3] : memref<128x32xf32, #tpu.memory_space<vmem>>, vector<128x32xf32>
    %cst = arith.constant dense<0.000000e+00> : vector<8x128xf32>
    %5 = tpu.matmul %0, %4, %cst {dimension_numbers = #tpu.dot_dimension_numbers<[1], [1], [0], [0], [0, 0, 1, 0], [], []>} : vector<8x32xf32>, vector<128x32xf32>, vector<8x128xf32> -> vector<8x128xf32>
    %c0_4 = arith.constant 0 : index
    %c0_5 = arith.constant 0 : index
    %6 = vector.load %arg5[%c0_4, %c0_5] : memref<1x128xf32, #tpu.memory_space<vmem>>, vector<1x128xf32>
    %7 = vector.broadcast %6 : vector<1x128xf32> to vector<8x128xf32>
    %8 = arith.addf %5, %7 : vector<8x128xf32>
    %c0_6 = arith.constant 0 : index
    %c0_7 = arith.constant 0 : index
    %9 = vector.load %arg6[%c0_6, %c0_7] : memref<8x128xf32, #tpu.memory_space<vmem>>, vector<8x128xf32>
    %cst_8 = arith.constant 0.000000e+00 : f32
    %10 = vector.broadcast %cst_8 : f32 to vector<8x128xf32>
    %11 = arith.cmpf ogt, %9, %10 : vector<8x128xf32>
    %cst_9 = arith.constant -9.99999993E+36 : f32
    %12 = vector.broadcast %cst_9 : f32 to vector<8x128xf32>
    %13 = arith.select %11, %12, %8 : vector<8x128xi1>, vector<8x128xf32>
    %c0_10 = arith.constant 0 : index
    %c0_11 = arith.constant 0 : index
    %14 = vector.load %arg8[%c0_10, %c0_11] : memref<8x128xf32, #tpu.memory_space<vmem>>, vector<8x128xf32>
    tpu.vector_store %arg8[%c0_10, %c0_11], %13 {strides = array<i32>} : memref<8x128xf32, #tpu.memory_space<vmem>>, vector<8x128xf32>,
    return
  }
  func.func @transform_0(%arg0: i32) -> (i32, i32) {
    %c0_i32 = arith.constant 0 : i32
    %c0_i32_0 = arith.constant 0 : i32
    %c0_i32_1 = arith.constant 0 : i32
    return %c0_i32, %c0_i32_0 : i32, i32
  }
  func.func @transform_1(%arg0: i32) -> (i32, i32) {
    %c0_i32 = arith.constant 0 : i32
    %c0_i32_0 = arith.constant 0 : i32
    %c0_i32_1 = arith.constant 0 : i32
    return %c0_i32, %c0_i32_0 : i32, i32
  }
  func.func @transform_2(%arg0: i32) -> (i32, i32) {
    %c0_i32 = arith.constant 0 : i32
    %c0_i32_0 = arith.constant 0 : i32
    %c0_i32_1 = arith.constant 0 : i32
    return %c0_i32, %c0_i32_0 : i32, i32
  }
  func.func @transform_3(%arg0: i32) -> (i32, i32) {
    %c0_i32 = arith.constant 0 : i32
    %c0_i32_0 = arith.constant 0 : i32
    return %arg0, %c0_i32 : i32, i32
  }
  func.func @transform_4(%arg0: i32) -> (i32, i32) {
    %c0_i32 = arith.constant 0 : i32
    %c0_i32_0 = arith.constant 0 : i32
    return %c0_i32, %arg0 : i32, i32
  }
  func.func @transform_5(%arg0: i32) -> (i32, i32) {
    %c0_i32 = arith.constant 0 : i32
    %c0_i32_0 = arith.constant 0 : i32
    return %c0_i32, %arg0 : i32, i32
  }
  func.func @transform_6(%arg0: i32) -> (i32, i32) {
    %c0_i32 = arith.constant 0 : i32
    %c0_i32_0 = arith.constant 0 : i32
    %c0_i32_1 = arith.constant 0 : i32
    return %c0_i32, %c0_i32_0 : i32, i32
  }
  func.func @transform_7(%arg0: i32) -> (i32, i32) {
    %c0_i32 = arith.constant 0 : i32
    %c0_i32_0 = arith.constant 0 : i32
    return %c0_i32, %arg0 : i32, i32
  }
}

</mosaic_0001>

<llo_original>
// kernel: tpu_custom_call.1
$region0: #{tpu_custom_call.1}
  #allocation0 [shape = 'u32[]', space=smem, size = 0x4, offset = 0x4, fixed_abs, tag = 'smem constant byte address 0x4 - core index']
  #allocation1 [shape = 'u32[144,128]{1,0:T(1,128)}', space=vmem, size = 0x12000, scoped, tag = 'internal scratch']
  %s0 = inlined_call_operand.vmem [shape: f32[8,32], index: 0, kind: input, shape index: {}]
  %s1 = inlined_call_operand.vmem [shape: f32[8,32], index: 1, kind: input, shape index: {}]
  %s2 = inlined_call_operand.vmem [shape: f32[8,1], index: 2, kind: input, shape index: {}]
  %s3 = inlined_call_operand.vmem [shape: f32[128,32], index: 3, kind: input, shape index: {}]
  %s4 = inlined_call_operand.vmem [shape: f32[1,128], index: 4, kind: input, shape index: {}]
  %s5 = inlined_call_operand.vmem [shape: f32[8,128], index: 5, kind: input, shape index: {}]
  %s6 = inlined_call_operand.vmem [shape: f32[8,1], index: 6, kind: output, shape index: {0}]
  %s7 = inlined_call_operand.hbm [shape: f32[8,128], index: 7, kind: output, shape index: {1}]
  %8 = xla_tuple %s6, %s7
  %s9 = sld [smem:[#allocation0]]
  $region46: #{tpu_custom_call.1} parent=0
    _
  %s11 = ssub.s32 1, %s9
  %s12 = scalar_select 0, %s11, %s9
  $region1: #{tpu_custom_call.1} parent=0
    #allocation2 [shape = 'u8[4096]{0}', space=vmem, size = 0x1000, scoped, tag = 'output window, operand 1, single buffered']
    #allocation3 [shape = 's32[1]{0}', space=sflag, size = 0x4, scoped, tag = 'scoped memory for tpu_custom_call.1']
    %13 = vsyncpa [#allocation3], 0
    // Predicated region
    $region2: #{tpu_custom_call.1} parent=1 // pred_check
      _
    $region3: #{tpu_custom_call.1} parent=1 // pred_check_branch
      %15 = sbr.rel (0) target = $region5
    $region4: #{tpu_custom_call.1} parent=1 // pred_region
      _
    $region5: #{tpu_custom_call.1} parent=1 // pred_fallthru
      _
    // Predicated region
    $region6: #{tpu_custom_call.1} parent=1 // pred_check
      _
    $region7: #{tpu_custom_call.1} parent=1 // pred_check_branch
      %17 = sbr.rel (0) target = $region9
    $region8: #{tpu_custom_call.1} parent=1 // pred_region
      _
    $region9: #{tpu_custom_call.1} parent=1 // pred_fallthru
      _
    // Predicated region
    $region10: #{tpu_custom_call.1} parent=1 // pred_check
      _
    $region11: #{tpu_custom_call.1} parent=1 // pred_check_branch
      %19 = sbr.rel (0) target = $region13
    $region12: #{tpu_custom_call.1} parent=1 // pred_region
      _
    $region13: #{tpu_custom_call.1} parent=1 // pred_fallthru
      _
    // Predicated region
    $region14: #{tpu_custom_call.1} parent=1 // pred_check
      _
    $region15: #{tpu_custom_call.1} parent=1 // pred_check_branch
      %21 = sbr.rel (0) target = $region17
    $region16: #{tpu_custom_call.1} parent=1 // pred_region
      _
    $region17: #{tpu_custom_call.1} parent=1 // pred_fallthru
      _
    // Predicated region
    $region18: #{tpu_custom_call.1} parent=1 // pred_check
      _
    $region19: #{tpu_custom_call.1} parent=1 // pred_check_branch
      %23 = sbr.rel (0) target = $region21
    $region20: #{tpu_custom_call.1} parent=1 // pred_region
      _
    $region21: #{tpu_custom_call.1} parent=1 // pred_fallthru
      _
    // Predicated region
    $region22: #{tpu_custom_call.1} parent=1 // pred_check
      _
    $region23: #{tpu_custom_call.1} parent=1 // pred_check_branch
      %25 = sbr.rel (0) target = $region25
    $region24: #{tpu_custom_call.1} parent=1 // pred_region
      _
    $region25: #{tpu_custom_call.1} parent=1 // pred_fallthru
      _
    %v26 = vld [vmem:[%s0] sm:$0xff]
    %p27 = scmp.eq.s32.totalorder 0, 0
    // Predicated region
    $region26: #{tpu_custom_call.1} parent=1 // pred_check
      %p28 = pneg %p27
    $region27: #{tpu_custom_call.1} parent=1 // pred_check_branch
      %30 = sbr.rel (%p28) target = $region29
    $region28: #{tpu_custom_call.1} parent=1 // pred_region
      %v31 = vld [vmem:[%s1] sm:$0xff]
      %v32 = vmul.f32 %v26, %v31
      %vm33 = vcmask 261120
      %v34 = vsel %vm33, %v32, 0.0
      %35 = vadd.xlane.f32.xlu0 %v34
      %v36 = vpop.xlane.xlu0 %35
      %v37 = vld [vmem:[%s2] sm:$0xff]
      %v38 = vadd.f32 %v36, %v37
      %vm39 = vcmask 7168
      %40 = vst.msk [vmem:[%s6] sm:$0xff] %vm39, %v38
    $region29: #{tpu_custom_call.1} parent=1 // pred_fallthru
      _
    %v41 = vld [vmem:[%s3] sm:$0xff]
    %v42 = vld [vmem:[%s3 + $0x8] sm:$0xff]
    %v43 = vld [vmem:[%s3 + $0x10] sm:$0xff]
    %v44 = vld [vmem:[%s3 + $0x18] sm:$0xff]
    %v45 = vld [vmem:[%s3 + $0x20] sm:$0xff]
    %v46 = vld [vmem:[%s3 + $0x28] sm:$0xff]
    %v47 = vld [vmem:[%s3 + $0x30] sm:$0xff]
    %v48 = vld [vmem:[%s3 + $0x38] sm:$0xff]
    %v49 = vld [vmem:[%s3 + $0x40] sm:$0xff]
    %v50 = vld [vmem:[%s3 + $0x48] sm:$0xff]
    %v51 = vld [vmem:[%s3 + $0x50] sm:$0xff]
    %v52 = vld [vmem:[%s3 + $0x58] sm:$0xff]
    %v53 = vld [vmem:[%s3 + $0x60] sm:$0xff]
    %v54 = vld [vmem:[%s3 + $0x68] sm:$0xff]
    %v55 = vld [vmem:[%s3 + $0x70] sm:$0xff]
    %v56 = vld [vmem:[%s3 + $0x78] sm:$0xff]
    %v57 = vld [vmem:[%s4] sm:$0x1]
    %v59 = vlaneseq
    %v60 = vshrl.u32 %v59, 7
    %v61 = vsub.s32 0, %v60
    %v62 = vrot.slane %v57, %v61
    %vm64 = vcmask 261120
    %v66 = vsel %vm64, %v26, 0
    %v69 = vsel %vm64, %v41, 0
    %v72 = vsel %vm64, %v42, 0
    %v75 = vsel %vm64, %v43, 0
    %v78 = vsel %vm64, %v44, 0
    %v81 = vsel %vm64, %v45, 0
    %v84 = vsel %vm64, %v46, 0
    %v87 = vsel %vm64, %v47, 0
    %v90 = vsel %vm64, %v48, 0
    %v93 = vsel %vm64, %v49, 0
    %v96 = vsel %vm64, %v50, 0
    %v99 = vsel %vm64, %v51, 0
    %v102 = vsel %vm64, %v52, 0
    %v105 = vsel %vm64, %v53, 0
    %v108 = vsel %vm64, %v54, 0
    %v111 = vsel %vm64, %v55, 0
    %v114 = vsel %vm64, %v56, 0
    %116 = vmatprep.subr.mxu0 0.0
    %117 = vmatpush1.xpose.msra.mxu0 %v114
    %118 = vmatprep.subr.mxu0 0.0
    %119 = vmatpush1.xpose.msra.mxu0 %v111
    %120 = vmatprep.subr.mxu0 0.0
    %121 = vmatpush1.xpose.msra.mxu0 %v108
    %122 = vmatprep.subr.mxu0 0.0
    %123 = vmatpush1.xpose.msra.mxu0 %v105
    %124 = vmatprep.subr.mxu0 0.0
    %125 = vmatpush1.xpose.msra.mxu0 %v102
    %126 = vmatprep.subr.mxu0 0.0
    %127 = vmatpush1.xpose.msra.mxu0 %v99
    %128 = vmatprep.subr.mxu0 0.0
    %129 = vmatpush1.xpose.msra.mxu0 %v96
    %130 = vmatprep.subr.mxu0 0.0
    %131 = vmatpush1.xpose.msra.mxu0 %v93
    %132 = vmatprep.subr.mxu0 0.0
    %133 = vmatpush1.xpose.msra.mxu0 %v90
    %134 = vmatprep.subr.mxu0 0.0
    %135 = vmatpush1.xpose.msra.mxu0 %v87
    %136 = vmatprep.subr.mxu0 0.0
    %137 = vmatpush1.xpose.msra.mxu0 %v84
    %138 = vmatprep.subr.mxu0 0.0
    %139 = vmatpush1.xpose.msra.mxu0 %v81
    %140 = vmatprep.subr.mxu0 0.0
    %141 = vmatpush1.xpose.msra.mxu0 %v78
    %142 = vmatprep.subr.mxu0 0.0
    %143 = vmatpush1.xpose.msra.mxu0 %v75
    %144 = vmatprep.subr.mxu0 0.0
    %145 = vmatpush1.xpose.msra.mxu0 %v72
    %146 = vmatprep.subr.mxu0 0.0
    %147 = vmatpush1.xpose.msra.mxu0 %v69
    %148 = vmatprep.subr.mxu0 0.0
    %149 = vmatpush2.xpose.msra.mxu0 0.0
    %150 = vmatprep.subr.mxu0 0.0
    %151 = vmatpush2.xpose.msra.mxu0 0.0
    %152 = vmatprep.subr.mxu0 0.0
    %153 = vmatpush2.xpose.msra.mxu0 0.0
    %154 = vmatprep.subr.mxu0 0.0
    %155 = vmatpush2.xpose.msra.mxu0 0.0
    %156 = vmatprep.subr.mxu0 0.0
    %157 = vmatpush2.xpose.msra.mxu0 0.0
    %158 = vmatprep.subr.mxu0 0.0
    %159 = vmatpush2.xpose.msra.mxu0 0.0
    %160 = vmatprep.subr.mxu0 0.0
    %161 = vmatpush2.xpose.msra.mxu0 0.0
    %162 = vmatprep.subr.mxu0 0.0
    %163 = vmatpush2.xpose.msra.mxu0 0.0
    %164 = vmatprep.subr.mxu0 0.0
    %165 = vmatpush2.xpose.msra.mxu0 0.0
    %166 = vmatprep.subr.mxu0 0.0
    %167 = vmatpush2.xpose.msra.mxu0 0.0
    %168 = vmatprep.subr.mxu0 0.0
    %169 = vmatpush2.xpose.msra.mxu0 0.0
    %170 = vmatprep.subr.mxu0 0.0
    %171 = vmatpush2.xpose.msra.mxu0 0.0
    %172 = vmatprep.subr.mxu0 0.0
    %173 = vmatpush2.xpose.msra.mxu0 0.0
    %174 = vmatprep.subr.mxu0 0.0
    %175 = vmatpush2.xpose.msra.mxu0 0.0
    %176 = vmatprep.subr.mxu0 0.0
    %177 = vmatpush2.xpose.msra.mxu0 0.0
    %178 = vmatprep.subr.mxu0 0.0
    %179 = vmatpush2.xpose.msra.mxu0 0.0
    %180 = vmatprep.mubr.f32.mxu0 0.0
    %181 = vmatmul.mubr.f32.gmra.mxu0 %v66
    %v182 = vpop.f32.mrf.mxu0
    %v183 = vadd.f32 %v62, %v182
    %v184 = vpop.f32.mrf.mxu0
    %185 = vdwg.mxu0
    %v186 = vld [vmem:[%s5] sm:$0xff]
    %vm187 = vcmp.gt.f32.partialorder %v186, 0.0
    %v188 = vsel %vm187, -1e+37, %v183
    %189 = vst [vmem:[#allocation2] sm:$0xff] %v188
    // Predicated region
    $region30: #{tpu_custom_call.1} parent=1 // pred_check
      _
    $region31: #{tpu_custom_call.1} parent=1 // pred_check_branch
      %191 = sbr.rel (0) target = $region33
    $region32: #{tpu_custom_call.1} parent=1 // pred_region
      _
    $region33: #{tpu_custom_call.1} parent=1 // pred_fallthru
      _
    // Predicated region
    $region34: #{tpu_custom_call.1} parent=1 // pred_check
      _
    $region35: #{tpu_custom_call.1} parent=1 // pred_check_branch
      %193 = sbr.rel (0) target = $region37
    $region36: #{tpu_custom_call.1} parent=1 // pred_region
      %s195 = ssub.s32 128, 128
      %196 = vsyncadd [#allocation3], %s195
      %s198 = sshll.u32 [#allocation2], 4
      %s199 = int_to_ptr.vmem [resolvable:$true] %s198
      %201 = dma.vmem_to_hbm [thread:$0]  %s199, 128, %s7, [#allocation3]
    $region37: #{tpu_custom_call.1} parent=1 // pred_fallthru
      _
    // Predicated region
    $region38: #{tpu_custom_call.1} parent=1 // pred_check
      _
    $region39: #{tpu_custom_call.1} parent=1 // pred_check_branch
      %203 = sbr.rel (0) target = $region41
    $region40: #{tpu_custom_call.1} parent=1 // pred_region
      _
    $region41: #{tpu_custom_call.1} parent=1 // pred_fallthru
      _
    // Predicated region
    $region42: #{tpu_custom_call.1} parent=1 // pred_check
      _
    $region43: #{tpu_custom_call.1} parent=1 // pred_check_branch
      %205 = sbr.rel (0) target = $region45
    $region44: #{tpu_custom_call.1} parent=1 // pred_region
      %206 = dma.done [#allocation3], 128
    $region45: #{tpu_custom_call.1} parent=1 // pred_fallthru
      _
    %207 = vsyncpa [#allocation3], 1

</llo_original>
